<compile_context>
chip_gen: v6e
topology: v6e:2x2x1
jax: 0.10.0
libtpu: 0.0.40
codegen_flags: <defaults>
</compile_context>

<pallas_src>
import functools

import jax
import jax.numpy as jnp
from jax.experimental import pallas as pl
from jax.experimental.pallas import tpu as pltpu


_SQRT_2_OVER_PI = 0.7978845608028654
_GELU_C = 0.044715


def _gelu_tanh(x):
    # GPT-2 / ChatGLM gelu (tanh approximation).  tanh rides the EUP slot;
    # the polynomial is kept minimal (3 muls + 1 add before the tanh).
    x3 = x * x * x
    return 0.5 * x * (1.0 + jnp.tanh(_SQRT_2_OVER_PI * (x + _GELU_C * x3)))


def glu_kernel(x_ref, w1_ref, b1_ref, w2_ref, b2_ref, o_ref, *scratch):
    # x_ref:  (tm, H)       current token tile
    # w1_ref: (H, tik)      K-chunk of dense_h_to_4h weight
    # b1_ref: (1, tik)      K-chunk of dense_h_to_4h bias
    # w2_ref: (tik, H)      K-chunk of dense_4h_to_h weight
    # b2_ref: (1, H)        dense_4h_to_h bias (seeds the accumulator at k==0)
    # o_ref:  (tm, H)       output tile (resident across k; acts as acc if f32)
    # scratch: optional (tm, H) f32 accumulator (only when output is not f32)
    use_scratch = len(scratch) == 1
    acc_ref = scratch[0] if use_scratch else o_ref
    k = pl.program_id(1)

    @pl.when(k == 0)
    def _init():
        # Seed with b2 so finalize needs no extra (tm, H) VPU pass.
        acc_ref[...] = jnp.broadcast_to(
            b2_ref[...], acc_ref.shape).astype(acc_ref.dtype)

    # dense_h_to_4h (this K-chunk) + bias + activation.
    h = jnp.dot(x_ref[...], w1_ref[...],
                preferred_element_type=jnp.float32) + b1_ref[...]
    g = _gelu_tanh(h)

    # dense_4h_to_h partial product, accumulated in f32.
    # Note: g is rounded to the W2 dtype before matmul-2 (mixed precision).
    acc_ref[...] += jnp.dot(g.astype(w2_ref.dtype), w2_ref[...],
                            preferred_element_type=jnp.float32)

    if use_scratch:
        @pl.when(k == pl.num_programs(1) - 1)
        def _finalize():
            o_ref[...] = acc_ref[...].astype(o_ref.dtype)


def _round_up(x, m):
    return ((x + m - 1) // m) * m


def _vmem_capacity_bytes():
    try:
        cap = getattr(pltpu.get_tpu_info(), "vmem_capacity_bytes", None)
        if cap:
            return int(cap)
    except Exception:
        pass
    return 128 * 1024 * 1024  # conservative default (v5e/v6e class)


def _auto_tiles(M, H, IH, x_itemsize, w_itemsize, need_acc, vmem_budget):
    """Pick (tm, tik).  Prefer the largest tm (sets HBM arithmetic intensity);
    shrink tik first when VMEM-constrained, keeping tik >= 256 when possible."""
    m_cap = _round_up(max(M, 1), 8)
    tm_cands = [t for t in (1024, 512, 256, 128, 64, 32, 16, 8) if t <= m_cap]
    if not tm_cands:
        tm_cands = [m_cap]
    if m_cap <= 1024 and m_cap not in tm_cands:
        tm_cands.append(m_cap)
    tm_cands = sorted(set(tm_cands), reverse=True)

    ik_cap = _round_up(max(IH, 1), 128)
    tik_cands = [t for t in (1024, 512, 256, 128) if t <= ik_cap]
    if not tik_cands:
        tik_cands = [ik_cap]
    if ik_cap <= 1024 and ik_cap not in tik_cands:
        tik_cands.append(ik_cap)
    tik_cands = sorted(set(tik_cands), reverse=True)
    primary_tiks = [t for t in tik_cands if t >= 256] or tik_cands

    def footprint(tm, tik):
        x_buf = 2 * tm * H * x_itemsize          # double-buffered input block
        out_buf = 2 * tm * H * x_itemsize        # double-buffered output block
        w1_buf = 2 * H * tik * w_itemsize
        w2_buf = 2 * tik * H * w_itemsize
        b_buf = 2 * (tik + H) * w_itemsize
        acc_buf = tm * H * 4 if need_acc else 0
        temps = tm * tik * 8                     # h (f32) + g (f32) temporaries
        return x_buf + out_buf + w1_buf + w2_buf + b_buf + acc_buf + temps

    for tiks in (primary_tiks, tik_cands):
        for tm in tm_cands:                      # largest tm first (AI knob)
            for tik in tiks:                     # then largest tik that fits
                if footprint(tm, tik) <= vmem_budget:
                    return tm, tik
    return tm_cands[-1], tik_cands[-1]           # tiny-shape / worst-case fallback


@functools.partial(jax.jit, static_argnames=("tm", "tik", "vmem_limit_bytes"))
def glu_forward(hidden_states, w1, b1, w2, b2, *, tm=None, tik=None,
                vmem_limit_bytes=None):
    """hidden_states: [seq_len, batch, hidden]; returns same shape/dtype.

    w1: [hidden, inner], b1: [inner], w2: [inner, hidden], b2: [hidden]
    (weights stored transposed vs torch.nn.Linear).  Pass bf16 operands for
    full MXU throughput; accumulation is always f32.
    """
    S, B, H = hidden_states.shape
    IH = w1.shape[1]
    M = S * B

    x_itemsize = hidden_states.dtype.itemsize
    w_itemsize = w1.dtype.itemsize
    out_is_f32 = hidden_states.dtype == jnp.float32
    use_scratch = not out_is_f32

    # Per-generation VMEM limit (~75% of physical per-core capacity):
    # 128 MiB (v5e/v6e) -> ~96 MiB, 64 MiB (v7x) -> ~48 MiB.
    if vmem_limit_bytes is None:
        vmem_limit_bytes = int(_vmem_capacity_bytes() * 0.75)

    auto_tm, auto_tik = _auto_tiles(M, H, IH, x_itemsize, w_itemsize,
                                    use_scratch, vmem_limit_bytes)
    tm_eff = min(tm, _round_up(M, 8)) if tm is not None else auto_tm
    tik_eff = tik if tik is not None else auto_tik
    tik_eff = min(tik_eff, _round_up(IH, 128))

    M_pad = _round_up(M, tm_eff)
    IH_pad = _round_up(IH, tik_eff)

    x2d = hidden_states.reshape(M, H)
    if M_pad != M:
        x2d = jnp.pad(x2d, ((0, M_pad - M), (0, 0)))

    w1_p, b1_p, w2_p = w1, b1, w2
    if IH_pad != IH:
        # Zero-padded W1 columns / b1 entries / W2 rows contribute nothing.
        w1_p = jnp.pad(w1, ((0, 0), (0, IH_pad - IH)))
        b1_p = jnp.pad(b1, ((0, IH_pad - IH),))
        w2_p = jnp.pad(w2, ((0, IH_pad - IH), (0, 0)))
    b1_2d = b1_p.reshape(1, IH_pad)
    b2_2d = b2.reshape(1, H)

    m_tiles = M_pad // tm_eff
    k_tiles = IH_pad // tik_eff

    cost = pl.CostEstimate(
        flops=4 * M_pad * H * IH_pad,            # two matmuls, 2 flops/MAC
        transcendentals=M_pad * IH_pad,          # one tanh per inner element
        bytes_accessed=(
            M_pad * H * x_itemsize               # x read
            + M_pad * H * x_itemsize             # out write
            + m_tiles * (2 * H * IH_pad + IH_pad) * w_itemsize  # W1+W2+b1 per M tile
            + H * w_itemsize),                   # b2 fetched once
    )

    scratch_shapes = (
        [pltpu.VMEM((tm_eff, H), jnp.float32)] if use_scratch else [])

    out2d = pl.pallas_call(
        glu_kernel,
        out_shape=jax.ShapeDtypeStruct((M_pad, H), hidden_states.dtype),
        grid_spec=pltpu.PrefetchScalarGridSpec(
            num_scalar_prefetch=0,
            grid=(m_tiles, k_tiles),
            in_specs=[
                pl.BlockSpec((tm_eff, H), lambda i, k: (i, 0)),     # x tile
                pl.BlockSpec((H, tik_eff), lambda i, k: (0, k)),    # W1 K-chunk
                pl.BlockSpec((1, tik_eff), lambda i, k: (0, k)),    # b1 K-chunk
                pl.BlockSpec((tik_eff, H), lambda i, k: (k, 0)),    # W2 K-chunk
                pl.BlockSpec((1, H), lambda i, k: (0, 0)),          # b2 (seed)
            ],
            out_specs=pl.BlockSpec((tm_eff, H), lambda i, k: (i, 0)),
            scratch_shapes=scratch_shapes,
        ),
        compiler_params=pltpu.CompilerParams(
            dimension_semantics=("parallel", "arbitrary"),
            vmem_limit_bytes=int(vmem_limit_bytes),
        ),
        cost_estimate=cost,
    )(x2d, w1_p, b1_2d, w2_p, b2_2d)

    if M_pad != M:
        out2d = out2d[:M]
    return out2d.reshape(S, B, H)


if __name__ == "__main__":
    # Small shapes consistent with the module's forward:
    # hidden_states: [seq_len, batch, hidden_size], inner = 4 * hidden.
    seq_len, batch, hidden = 8, 2, 32
    inner = 4 * hidden

    key = jax.random.PRNGKey(0)
    kx, kw1, kb1, kw2, kb2 = jax.random.split(key, 5)

    x = jax.random.normal(kx, (seq_len, batch, hidden), dtype=jnp.float32)
    # Parameters stored as [in, out], i.e. torch weight transposed.
    w1 = jax.random.normal(kw1, (hidden, inner), dtype=jnp.float32) * 0.02
    b1 = jax.random.normal(kb1, (inner,), dtype=jnp.float32) * 0.02
    w2 = jax.random.normal(kw2, (inner, hidden), dtype=jnp.float32) * 0.02
    b2 = jax.random.normal(kb2, (hidden,), dtype=jnp.float32) * 0.02

    # Pure-JAX reference.
    h_ref = x.reshape(-1, hidden) @ w1 + b1
    g_ref = _gelu_tanh(h_ref)
    ref = (g_ref @ w2 + b2).reshape(seq_len, batch, hidden)

    # f32 path: accumulates directly into the resident output block (no scratch).
    out = jax.block_until_ready(glu_forward(x, w1, b1, w2, b2))
    assert out.shape == (seq_len, batch, hidden)
    assert jnp.allclose(out, ref, atol=1e-5, rtol=1e-5), "f32 mismatch vs reference"

    # bf16 path: MXU-friendly operands, f32 scratch accumulator.
    xb, w1b, b1b, w2b, b2b = (a.astype(jnp.bfloat16) for a in (x, w1, b1, w2, b2))
    out_bf16 = jax.block_until_ready(glu_forward(xb, w1b, b1b, w2b, b2b))
    assert out_bf16.shape == (seq_len, batch, hidden)
    assert jnp.allclose(out_bf16.astype(jnp.float32), ref, atol=5e-2, rtol=5e-2), \
        "bf16 mismatch vs reference"

    print("KERNEL_OK")
</pallas_src>

<mosaic_0001>
module attributes {stable_mosaic.version = 11 : i64} {
  func.func @glu_kernel(%arg0: i32, %arg1: i32, %arg2: memref<16x32xf32, #tpu.memory_space<vmem>>, %arg3: memref<32x128xf32, #tpu.memory_space<vmem>>, %arg4: memref<1x128xf32, #tpu.memory_space<vmem>>, %arg5: memref<128x32xf32, #tpu.memory_space<vmem>>, %arg6: memref<1x32xf32, #tpu.memory_space<vmem>>, %arg7: memref<16x32xf32, #tpu.memory_space<vmem>>) attributes {dimension_semantics = [#tpu.dimension_semantics<parallel>, #tpu.dimension_semantics<arbitrary>], iteration_bounds = array<i64: 1, 1>, scalar_prefetch = 0 : i64, scratch_operands = 0 : i64, tpu.core_type = #tpu.core_type<tc>, window_params = [{transform_indices = @transform_0, window_bounds = array<i64: 16, 32>}, {transform_indices = @transform_1, window_bounds = array<i64: 32, 128>}, {transform_indices = @transform_2, window_bounds = array<i64: 1, 128>}, {transform_indices = @transform_3, window_bounds = array<i64: 128, 32>}, {pipeline_mode = #tpu.pipeline_mode<synchronous>, transform_indices = @transform_4, window_bounds = array<i64: 1, 32>}, {transform_indices = @transform_5, window_bounds = array<i64: 16, 32>}]} {
    %c0_i32 = arith.constant 0 : i32
    %0 = arith.cmpi eq, %arg1, %c0_i32 : i32
    %1 = arith.extui %0 : i1 to i32
    %c0_i32_0 = arith.constant 0 : i32
    %2 = arith.cmpi ne, %1, %c0_i32_0 : i32
    scf.if %2 {
      %c0_17 = arith.constant 0 : index
      %c0_18 = arith.constant 0 : index
      %27 = vector.load %arg6[%c0_17, %c0_18] : memref<1x32xf32, #tpu.memory_space<vmem>>, vector<1x32xf32>
      %28 = vector.shape_cast %27 : vector<1x32xf32> to vector<1x32xf32>
      %29 = vector.broadcast %28 : vector<1x32xf32> to vector<16x32xf32>
      %c0_19 = arith.constant 0 : index
      %c0_20 = arith.constant 0 : index
      %30 = vector.load %arg7[%c0_19, %c0_20] : memref<16x32xf32, #tpu.memory_space<vmem>>, vector<16x32xf32>
      tpu.vector_store %arg7[%c0_19, %c0_20], %29 {strides = array<i32>} : memref<16x32xf32, #tpu.memory_space<vmem>>, vector<16x32xf32>,
    } else {
    }
    %c0 = arith.constant 0 : index
    %c0_1 = arith.constant 0 : index
    %3 = vector.load %arg2[%c0, %c0_1] : memref<16x32xf32, #tpu.memory_space<vmem>>, vector<16x32xf32>
    %c0_2 = arith.constant 0 : index
    %c0_3 = arith.constant 0 : index
    %4 = vector.load %arg3[%c0_2, %c0_3] : memref<32x128xf32, #tpu.memory_space<vmem>>, vector<32x128xf32>
    %cst = arith.constant dense<0.000000e+00> : vector<16x128xf32>
    %5 = tpu.matmul %3, %4, %cst {dimension_numbers = #tpu.dot_dimension_numbers<[1], [0], [0], [1], [0, 0, 1, 1], [], []>} : vector<16x32xf32>, vector<32x128xf32>, vector<16x128xf32> -> vector<16x128xf32>
    %c0_4 = arith.constant 0 : index
    %c0_5 = arith.constant 0 : index
    %6 = vector.load %arg4[%c0_4, %c0_5] : memref<1x128xf32, #tpu.memory_space<vmem>>, vector<1x128xf32>
    %7 = vector.broadcast %6 : vector<1x128xf32> to vector<16x128xf32>
    %8 = arith.addf %5, %7 : vector<16x128xf32>
    %9 = arith.mulf %8, %8 : vector<16x128xf32>
    %10 = arith.mulf %9, %8 : vector<16x128xf32>
    %cst_6 = arith.constant 5.000000e-01 : f32
    %11 = vector.broadcast %cst_6 : f32 to vector<16x128xf32>
    %12 = arith.mulf %11, %8 : vector<16x128xf32>
    %cst_7 = arith.constant 4.471500e-02 : f32
    %13 = vector.broadcast %cst_7 : f32 to vector<16x128xf32>
    %14 = arith.mulf %13, %10 : vector<16x128xf32>
    %15 = arith.addf %8, %14 : vector<16x128xf32>
    %cst_8 = arith.constant 0.797884583 : f32
    %16 = vector.broadcast %cst_8 : f32 to vector<16x128xf32>
    %17 = arith.mulf %16, %15 : vector<16x128xf32>
    %18 = math.tanh %17 : vector<16x128xf32>
    %cst_9 = arith.constant 1.000000e+00 : f32
    %19 = vector.broadcast %cst_9 : f32 to vector<16x128xf32>
    %20 = arith.addf %19, %18 : vector<16x128xf32>
    %21 = arith.mulf %12, %20 : vector<16x128xf32>
    %c0_10 = arith.constant 0 : index
    %c0_11 = arith.constant 0 : index
    %22 = vector.load %arg7[%c0_10, %c0_11] : memref<16x32xf32, #tpu.memory_space<vmem>>, vector<16x32xf32>
    %c0_12 = arith.constant 0 : index
    %c0_13 = arith.constant 0 : index
    %23 = vector.load %arg5[%c0_12, %c0_13] : memref<128x32xf32, #tpu.memory_space<vmem>>, vector<128x32xf32>
    %cst_14 = arith.constant dense<0.000000e+00> : vector<16x32xf32>
    %24 = tpu.matmul %21, %23, %cst_14 {dimension_numbers = #tpu.dot_dimension_numbers<[1], [0], [0], [1], [0, 0, 1, 1], [], []>} : vector<16x128xf32>, vector<128x32xf32>, vector<16x32xf32> -> vector<16x32xf32>
    %25 = arith.addf %22, %24 : vector<16x32xf32>
    %c0_15 = arith.constant 0 : index
    %c0_16 = arith.constant 0 : index
    %26 = vector.load %arg7[%c0_15, %c0_16] : memref<16x32xf32, #tpu.memory_space<vmem>>, vector<16x32xf32>
    tpu.vector_store %arg7[%c0_15, %c0_16], %25 {strides = array<i32>} : memref<16x32xf32, #tpu.memory_space<vmem>>, vector<16x32xf32>,
    return
  }
  func.func @transform_0(%arg0: i32, %arg1: i32) -> (i32, i32) {
    %c0_i32 = arith.constant 0 : i32
    %c0_i32_0 = arith.constant 0 : i32
    return %arg0, %c0_i32 : i32, i32
  }
  func.func @transform_1(%arg0: i32, %arg1: i32) -> (i32, i32) {
    %c0_i32 = arith.constant 0 : i32
    %c0_i32_0 = arith.constant 0 : i32
    return %c0_i32, %arg1 : i32, i32
  }
  func.func @transform_2(%arg0: i32, %arg1: i32) -> (i32, i32) {
    %c0_i32 = arith.constant 0 : i32
    %c0_i32_0 = arith.constant 0 : i32
    return %c0_i32, %arg1 : i32, i32
  }
  func.func @transform_3(%arg0: i32, %arg1: i32) -> (i32, i32) {
    %c0_i32 = arith.constant 0 : i32
    %c0_i32_0 = arith.constant 0 : i32
    return %arg1, %c0_i32 : i32, i32
  }
  func.func @transform_4(%arg0: i32, %arg1: i32) -> (i32, i32) {
    %c0_i32 = arith.constant 0 : i32
    %c0_i32_0 = arith.constant 0 : i32
    %c0_i32_1 = arith.constant 0 : i32
    return %c0_i32, %c0_i32_0 : i32, i32
  }
  func.func @transform_5(%arg0: i32, %arg1: i32) -> (i32, i32) {
    %c0_i32 = arith.constant 0 : i32
    %c0_i32_0 = arith.constant 0 : i32
    return %arg0, %c0_i32 : i32, i32
  }
}

</mosaic_0001>

<llo_original>
// kernel: glu_forward.1
$region0: #{glu_forward.1}
  #allocation0 [shape = 'u32[]', space=smem, size = 0x4, offset = 0x4, fixed_abs, tag = 'smem constant byte address 0x4 - core index']
  #allocation1 [shape = 'u32[144,128]{1,0:T(1,128)}', space=vmem, size = 0x12000, scoped, tag = 'internal scratch']
  %s0 = inlined_call_operand.vmem [shape: f32[16,32], index: 0, kind: input, shape index: {}]
  %s1 = inlined_call_operand.vmem [shape: f32[32,128], index: 1, kind: input, shape index: {}]
  %s2 = inlined_call_operand.vmem [shape: f32[1,128], index: 2, kind: input, shape index: {}]
  %s3 = inlined_call_operand.vmem [shape: f32[128,32], index: 3, kind: input, shape index: {}]
  %s4 = inlined_call_operand.vmem [shape: f32[1,32], index: 4, kind: input, shape index: {}]
  %s5 = inlined_call_operand.hbm [shape: f32[16,32], index: 5, kind: output, shape index: {}]
  %s6 = sld [smem:[#allocation0]]
  $region34: #{glu_forward.1} parent=0
    _
  %s8 = ssub.s32 1, %s6
  %s9 = scalar_select 0, %s8, %s6
  $region1: #{glu_forward.1} parent=0
    #allocation2 [shape = 'u8[8192]{0}', space=vmem, size = 0x2000, scoped, tag = 'output window, operand 0, single buffered']
    #allocation3 [shape = 's32[1]{0}', space=sflag, size = 0x4, scoped, tag = 'scoped memory for glu_forward.1']
    %10 = vsyncpa [#allocation3], 0
    // Predicated region
    $region2: #{glu_forward.1} parent=1 // pred_check
      _
    $region3: #{glu_forward.1} parent=1 // pred_check_branch
      %12 = sbr.rel (0) target = $region5
    $region4: #{glu_forward.1} parent=1 // pred_region
      _
    $region5: #{glu_forward.1} parent=1 // pred_fallthru
      _
    // Predicated region
    $region6: #{glu_forward.1} parent=1 // pred_check
      _
    $region7: #{glu_forward.1} parent=1 // pred_check_branch
      %14 = sbr.rel (0) target = $region9
    $region8: #{glu_forward.1} parent=1 // pred_region
      _
    $region9: #{glu_forward.1} parent=1 // pred_fallthru
      _
    // Predicated region
    $region10: #{glu_forward.1} parent=1 // pred_check
      _
    $region11: #{glu_forward.1} parent=1 // pred_check_branch
      %16 = sbr.rel (0) target = $region13
    $region12: #{glu_forward.1} parent=1 // pred_region
      _
    $region13: #{glu_forward.1} parent=1 // pred_fallthru
      _
    // Predicated region
    $region14: #{glu_forward.1} parent=1 // pred_check
      _
    $region15: #{glu_forward.1} parent=1 // pred_check_branch
      %18 = sbr.rel (0) target = $region17
    $region16: #{glu_forward.1} parent=1 // pred_region
      _
    $region17: #{glu_forward.1} parent=1 // pred_fallthru
      _
    // Predicated region
    $region18: #{glu_forward.1} parent=1 // pred_check
      _
    $region19: #{glu_forward.1} parent=1 // pred_check_branch
      %20 = sbr.rel (0) target = $region21
    $region20: #{glu_forward.1} parent=1 // pred_region
      _
    $region21: #{glu_forward.1} parent=1 // pred_fallthru
      _
    %p21 = scmp.eq.s32.totalorder 0, 0
    // Predicated region
    $region22: #{glu_forward.1} parent=1 // pred_check
      %p22 = pneg %p21
    $region23: #{glu_forward.1} parent=1 // pred_check_branch
      %24 = sbr.rel (%p22) target = $region25
    $region24: #{glu_forward.1} parent=1 // pred_region
      %v25 = vld [vmem:[%s4] sm:$0x1]
      %v27 = vlaneseq
      %v28 = vshrl.u32 %v27, 7
      %v29 = vsub.s32 0, %v28
      %v30 = vrot.slane %v25, %v29
      %vm32 = vcmask 261120
      %33 = vst.msk [vmem:[#allocation2] sm:$0xff] %vm32, %v30
      %34 = vst.msk [vmem:[#allocation2 + $0x8] sm:$0xff] %vm32, %v30
    $region25: #{glu_forward.1} parent=1 // pred_fallthru
      _
    %v35 = vld [vmem:[%s0] sm:$0xff]
    %v36 = vld [vmem:[%s0 + $0x8] sm:$0xff]
    %v37 = vld [vmem:[%s1] sm:$0xff]
    %v38 = vld [vmem:[%s1 + $0x8] sm:$0xff]
    %v39 = vld [vmem:[%s1 + $0x10] sm:$0xff]
    %v40 = vld [vmem:[%s1 + $0x18] sm:$0xff]
    %v41 = vld [vmem:[%s2] sm:$0x1]
    %v43 = vlaneseq
    %v44 = vshrl.u32 %v43, 7
    %v45 = vsub.s32 0, %v44
    %v46 = vrot.slane %v41, %v45
    %vm48 = vcmask 261120
    %v50 = vsel %vm48, %v35, 0
    %v53 = vsel %vm48, %v36, 0
    %55 = vmatprep.subr.mxu0 0.0
    %56 = vmatpush1.msra.mxu0 0.0
    %57 = vmatprep.subr.mxu0 0.0
    %58 = vmatpush1.msra.mxu0 0.0
    %59 = vmatprep.subr.mxu0 0.0
    %60 = vmatpush1.msra.mxu0 0.0
    %61 = vmatprep.subr.mxu0 0.0
    %62 = vmatpush1.msra.mxu0 0.0
    %63 = vmatprep.subr.mxu0 0.0
    %64 = vmatpush1.msra.mxu0 0.0
    %65 = vmatprep.subr.mxu0 0.0
    %66 = vmatpush1.msra.mxu0 0.0
    %67 = vmatprep.subr.mxu0 0.0
    %68 = vmatpush1.msra.mxu0 0.0
    %69 = vmatprep.subr.mxu0 0.0
    %70 = vmatpush1.msra.mxu0 0.0
    %71 = vmatprep.subr.mxu0 0.0
    %72 = vmatpush1.msra.mxu0 0.0
    %73 = vmatprep.subr.mxu0 0.0
    %74 = vmatpush1.msra.mxu0 0.0
    %75 = vmatprep.subr.mxu0 0.0
    %76 = vmatpush1.msra.mxu0 0.0
    %77 = vmatprep.subr.mxu0 0.0
    %78 = vmatpush1.msra.mxu0 0.0
    %79 = vmatprep.subr.mxu0 0.0
    %80 = vmatpush1.msra.mxu0 %v40
    %81 = vmatprep.subr.mxu0 0.0
    %82 = vmatpush1.msra.mxu0 %v39
    %83 = vmatprep.subr.mxu0 0.0
    %84 = vmatpush1.msra.mxu0 %v38
    %85 = vmatprep.subr.mxu0 0.0
    %86 = vmatpush1.msra.mxu0 %v37
    %87 = vmatprep.subr.mxu0 0.0
    %88 = vmatpush2.msra.mxu0 0.0
    %89 = vmatprep.subr.mxu0 0.0
    %90 = vmatpush2.msra.mxu0 0.0
    %91 = vmatprep.subr.mxu0 0.0
    %92 = vmatpush2.msra.mxu0 0.0
    %93 = vmatprep.subr.mxu0 0.0
    %94 = vmatpush2.msra.mxu0 0.0
    %95 = vmatprep.subr.mxu0 0.0
    %96 = vmatpush2.msra.mxu0 0.0
    %97 = vmatprep.subr.mxu0 0.0
    %98 = vmatpush2.msra.mxu0 0.0
    %99 = vmatprep.subr.mxu0 0.0
    %100 = vmatpush2.msra.mxu0 0.0
    %101 = vmatprep.subr.mxu0 0.0
    %102 = vmatpush2.msra.mxu0 0.0
    %103 = vmatprep.subr.mxu0 0.0
    %104 = vmatpush2.msra.mxu0 0.0
    %105 = vmatprep.subr.mxu0 0.0
    %106 = vmatpush2.msra.mxu0 0.0
    %107 = vmatprep.subr.mxu0 0.0
    %108 = vmatpush2.msra.mxu0 0.0
    %109 = vmatprep.subr.mxu0 0.0
    %110 = vmatpush2.msra.mxu0 0.0
    %111 = vmatprep.subr.mxu0 0.0
    %112 = vmatpush2.msra.mxu0 0.0
    %113 = vmatprep.subr.mxu0 0.0
    %114 = vmatpush2.msra.mxu0 0.0
    %115 = vmatprep.subr.mxu0 0.0
    %116 = vmatpush2.msra.mxu0 0.0
    %117 = vmatprep.subr.mxu0 0.0
    %118 = vmatpush2.msra.mxu0 0.0
    %119 = vmatprep.mubr.f32.mxu0 0.0
    %120 = vmatmul.mubr.f32.gmra.mxu0 %v50
    %v121 = vpop.f32.mrf.mxu0
    %v122 = vadd.f32 %v46, %v121
    %v123 = vpop.f32.mrf.mxu0
    %124 = vmatprep.mubr.f32.mxu0 0.0
    %125 = vmatmul.mubr.f32.gmra.mxu0 %v53
    %v126 = vpop.f32.mrf.mxu0
    %v127 = vadd.f32 %v46, %v126
    %v128 = vpop.f32.mrf.mxu0
    %129 = vdwg.mxu0
    %v130 = vmul.f32 %v122, %v122
    %v131 = vmul.f32 %v127, %v127
    %v132 = vmul.f32 %v130, %v122
    %v133 = vmul.f32 %v131, %v127
    %v134 = vmul.f32 %v122, 0.5
    %v135 = vmul.f32 %v127, 0.5
    %v136 = vmul.f32 %v132, 0.044715
    %v137 = vmul.f32 %v133, 0.044715
    %v138 = vadd.f32 %v122, %v136
    %v139 = vadd.f32 %v127, %v137
    %v140 = vmul.f32 %v138, 0.7978846
    %v141 = vmul.f32 %v139, 0.7978846
    %v142 = vtanh.pop %v140
    %v143 = vtanh.pop %v141
    %v144 = vadd.f32 %v142, 1.0
    %v145 = vadd.f32 %v143, 1.0
    %v146 = vmul.f32 %v134, %v144
    %v147 = vmul.f32 %v135, %v145
    %v148 = vld [vmem:[#allocation2] sm:$0xff]
    %v149 = vld [vmem:[#allocation2 + $0x8] sm:$0xff]
    %v150 = vld [vmem:[%s3] sm:$0xff]
    %v151 = vld [vmem:[%s3 + $0x8] sm:$0xff]
    %v152 = vld [vmem:[%s3 + $0x10] sm:$0xff]
    %v153 = vld [vmem:[%s3 + $0x18] sm:$0xff]
    %v154 = vld [vmem:[%s3 + $0x20] sm:$0xff]
    %v155 = vld [vmem:[%s3 + $0x28] sm:$0xff]
    %v156 = vld [vmem:[%s3 + $0x30] sm:$0xff]
    %v157 = vld [vmem:[%s3 + $0x38] sm:$0xff]
    %v158 = vld [vmem:[%s3 + $0x40] sm:$0xff]
    %v159 = vld [vmem:[%s3 + $0x48] sm:$0xff]
    %v160 = vld [vmem:[%s3 + $0x50] sm:$0xff]
    %v161 = vld [vmem:[%s3 + $0x58] sm:$0xff]
    %v162 = vld [vmem:[%s3 + $0x60] sm:$0xff]
    %v163 = vld [vmem:[%s3 + $0x68] sm:$0xff]
    %v164 = vld [vmem:[%s3 + $0x70] sm:$0xff]
    %v165 = vld [vmem:[%s3 + $0x78] sm:$0xff]
    %166 = vmatprep.subr.mxu0 0.0
    %167 = vmatpush1.msra.mxu0 %v165
    %168 = vmatprep.subr.mxu0 0.0
    %169 = vmatpush1.msra.mxu0 %v164
    %170 = vmatprep.subr.mxu0 0.0
    %171 = vmatpush1.msra.mxu0 %v163
    %172 = vmatprep.subr.mxu0 0.0
    %173 = vmatpush1.msra.mxu0 %v162
    %174 = vmatprep.subr.mxu0 0.0
    %175 = vmatpush1.msra.mxu0 %v161
    %176 = vmatprep.subr.mxu0 0.0
    %177 = vmatpush1.msra.mxu0 %v160
    %178 = vmatprep.subr.mxu0 0.0
    %179 = vmatpush1.msra.mxu0 %v159
    %180 = vmatprep.subr.mxu0 0.0
    %181 = vmatpush1.msra.mxu0 %v158
    %182 = vmatprep.subr.mxu0 0.0
    %183 = vmatpush1.msra.mxu0 %v157
    %184 = vmatprep.subr.mxu0 0.0
    %185 = vmatpush1.msra.mxu0 %v156
    %186 = vmatprep.subr.mxu0 0.0
    %187 = vmatpush1.msra.mxu0 %v155
    %188 = vmatprep.subr.mxu0 0.0
    %189 = vmatpush1.msra.mxu0 %v154
    %190 = vmatprep.subr.mxu0 0.0
    %191 = vmatpush1.msra.mxu0 %v153
    %192 = vmatprep.subr.mxu0 0.0
    %193 = vmatpush1.msra.mxu0 %v152
    %194 = vmatprep.subr.mxu0 0.0
    %195 = vmatpush1.msra.mxu0 %v151
    %196 = vmatprep.subr.mxu0 0.0
    %197 = vmatpush1.msra.mxu0 %v150
    %198 = vmatprep.subr.mxu0 0.0
    %199 = vmatpush2.msra.mxu0 0.0
    %200 = vmatprep.subr.mxu0 0.0
    %201 = vmatpush2.msra.mxu0 0.0
    %202 = vmatprep.subr.mxu0 0.0
    %203 = vmatpush2.msra.mxu0 0.0
    %204 = vmatprep.subr.mxu0 0.0
    %205 = vmatpush2.msra.mxu0 0.0
    %206 = vmatprep.subr.mxu0 0.0
    %207 = vmatpush2.msra.mxu0 0.0
    %208 = vmatprep.subr.mxu0 0.0
    %209 = vmatpush2.msra.mxu0 0.0
    %210 = vmatprep.subr.mxu0 0.0
    %211 = vmatpush2.msra.mxu0 0.0
    %212 = vmatprep.subr.mxu0 0.0
    %213 = vmatpush2.msra.mxu0 0.0
    %214 = vmatprep.subr.mxu0 0.0
    %215 = vmatpush2.msra.mxu0 0.0
    %216 = vmatprep.subr.mxu0 0.0
    %217 = vmatpush2.msra.mxu0 0.0
    %218 = vmatprep.subr.mxu0 0.0
    %219 = vmatpush2.msra.mxu0 0.0
    %220 = vmatprep.subr.mxu0 0.0
    %221 = vmatpush2.msra.mxu0 0.0
    %222 = vmatprep.subr.mxu0 0.0
    %223 = vmatpush2.msra.mxu0 0.0
    %224 = vmatprep.subr.mxu0 0.0
    %225 = vmatpush2.msra.mxu0 0.0
    %226 = vmatprep.subr.mxu0 0.0
    %227 = vmatpush2.msra.mxu0 0.0
    %228 = vmatprep.subr.mxu0 0.0
    %229 = vmatpush2.msra.mxu0 0.0
    %230 = vmatprep.mubr.f32.mxu0 0.0
    %231 = vmatmul.mubr.f32.gmra.mxu0 %v146
    %v232 = vpop.f32.mrf.mxu0
    %v233 = vadd.f32 0.0, %v232
    %v234 = vpop.f32.mrf.mxu0
    %235 = vmatprep.mubr.f32.mxu0 0.0
    %236 = vmatmul.mubr.f32.gmra.mxu0 %v147
    %v237 = vpop.f32.mrf.mxu0
    %v238 = vadd.f32 0.0, %v237
    %v239 = vpop.f32.mrf.mxu0
    %240 = vdwg.mxu0
    %v241 = vadd.f32 %v148, %v233
    %v242 = vadd.f32 %v149, %v238
    %243 = vst.msk [vmem:[#allocation2] sm:$0xff] %vm48, %v241
    %244 = vst.msk [vmem:[#allocation2 + $0x8] sm:$0xff] %vm48, %v242
    // Predicated region
    $region26: #{glu_forward.1} parent=1 // pred_check
      _
    $region27: #{glu_forward.1} parent=1 // pred_check_branch
      %246 = sbr.rel (0) target = $region29
    $region28: #{glu_forward.1} parent=1 // pred_region
      %s248 = ssub.s32 256, 256
      %249 = vsyncadd [#allocation3], %s248
      %s250 = sshll.u32 [#allocation2], 4
      %s251 = int_to_ptr.vmem [resolvable:$true] %s250
      %256 = dma.vmem_to_hbm [thread:$0]  %s251, 256, %s5, [#allocation3], 128, 128, 8
    $region29: #{glu_forward.1} parent=1 // pred_fallthru
      _
    // Predicated region
    $region30: #{glu_forward.1} parent=1 // pred_check
      _
    $region31: #{glu_forward.1} parent=1 // pred_check_branch
      %258 = sbr.rel (0) target = $region33
    $region32: #{glu_forward.1} parent=1 // pred_region
      %259 = dma.done [#allocation3], 256
    $region33: #{glu_forward.1} parent=1 // pred_fallthru
      _
    %260 = vsyncpa [#allocation3], 1

</llo_original>
